<compile_context>
chip_gen: v7x
topology: tpu7x:2x2x1
jax: 0.10.0
libtpu: 0.0.40
codegen_flags: <defaults>
</compile_context>

<pallas_src>
import functools

import jax
import jax.numpy as jnp
import numpy as np
from jax.experimental import pallas as pl
from jax.experimental.pallas import tpu as pltpu

_SUBLANE = 8                        # f32 sublane count
_MAX_TILE_B = 1024                  # max rows per batch tile (gridded path)
_GRIDLESS_MAX_B = 64                # batches <= this take the grid-less path
_VMEM_SOFT_LIMIT = 32 * 1024 * 1024  # default scoped-VMEM budget we plan against


def _cdiv(a, b):
    return -(-a // b)


def _round_up(n, m):
    return ((n + m - 1) // m) * m


def _mlp_fused_kernel(*refs, acts):
    """refs = (x_ref, w0_ref, b0_ref, w1_ref, b1_ref, ..., o_ref).

    Chains every Linear(+activation) of the MLP on-chip; intermediates stay in
    vregs/VMEM as f32 until the single final store.
    """
    x_ref, o_ref = refs[0], refs[-1]
    wb = refs[1:-1]
    h = x_ref[...].astype(jnp.float32)
    for li, act in enumerate(acts):
        w_ref = wb[2 * li]
        b = wb[2 * li + 1][...].astype(jnp.float32)   # (1, dout), broadcasts
        # bf16 weights feed the MXU directly; accumulation stays f32.
        lhs = h if w_ref.dtype == jnp.float32 else h.astype(w_ref.dtype)
        h = jnp.dot(lhs, w_ref[...], preferred_element_type=jnp.float32) + b
        if act == "relu":
            h = jnp.maximum(h, 0.0)
        elif act == "tanh":
            h = jnp.tanh(h)
        # act is None -> identity
    o_ref[...] = h.astype(o_ref.dtype)


def mlp_forward(x, params, acts, output_dim):
    """x: [B, Din].  params: list of (W [din, dout], b [1, dout]), unpadded."""
    B, Din = x.shape
    itemsize = x.dtype.itemsize

    flat_wb = []
    for w, b in params:
        flat_wb.extend((w, b))
    wb_bytes = sum(int(a.size) * a.dtype.itemsize for a in flat_wb)

    kernel = functools.partial(_mlp_fused_kernel, acts=tuple(acts))

    # Advisory cost estimate so XLA places/overlaps the custom call correctly.
    flops = 0
    trans = 0
    for (w, _), act in zip(params, acts):
        flops += 2 * B * int(w.shape[0]) * int(w.shape[1])
        if act == "tanh":
            trans += B * int(w.shape[1])
    bytes_accessed = (B * Din * itemsize + wb_bytes + B * output_dim * itemsize)
    cost = pl.CostEstimate(flops=flops, transcendentals=trans,
                           bytes_accessed=bytes_accessed)

    if B <= _GRIDLESS_MAX_B:
        # Grid-less fused call: whole (unpadded) arrays are VMEM-resident,
        # no pad, no slice, no per-step pipeline overhead, one launch.
        return pl.pallas_call(
            kernel,
            out_shape=jax.ShapeDtypeStruct((B, output_dim), x.dtype),
            cost_estimate=cost,
        )(x, *flat_wb)

    # Batch-tiled path: an even number of tiles (>= 2) so v7x's two
    # TensorCores both get work via the "parallel" grid axis; tiles are
    # 512-1024 rows for large B so per-grid-step overhead is amortized.
    n_tiles = 2 * _cdiv(B, 2 * _MAX_TILE_B)
    tile_b = _round_up(_cdiv(B, n_tiles), _SUBLANE)
    b_pad = n_tiles * tile_b                      # pads at most a few rows
    x_p = jnp.pad(x, ((0, b_pad - B), (0, 0))) if b_pad != B else x

    in_specs = [pl.BlockSpec((tile_b, Din), lambda i: (i, 0))]
    for w, b in params:
        # Constant index_map -> never re-DMA'd across batch tiles.
        # TODO(synk): mark these single-buffered (pipeline_mode=pl.Buffered(1))
        # once stable, to halve their VMEM footprint under v7x's 64 MiB.
        in_specs.append(pl.BlockSpec(tuple(w.shape), lambda i: (0, 0)))
        in_specs.append(pl.BlockSpec(tuple(b.shape), lambda i: (0, 0)))

    # VMEM budget: resident weights (double-buffered by the pipeline) plus
    # double-buffered x/out tiles plus live f32 intermediates.
    max_width = max(max(int(w.shape[1]) for w, _ in params), Din)
    vmem_need = (2 * wb_bytes
                 + 2 * tile_b * (Din + output_dim) * itemsize
                 + 4 * tile_b * max_width * 4)
    cp_kwargs = {}
    if vmem_need > _VMEM_SOFT_LIMIT:
        # TODO(synk): if vmem_need ever exceeds ~64 MiB (v7x physical VMEM per
        # core), fall back to a per-layer pipelined variant (pltpu.emit_pipeline
        # over the widest layer) instead of the fully fused kernel.
        cp_kwargs["vmem_limit_bytes"] = int(min(vmem_need, 64 * 1024 * 1024))

    out_p = pl.pallas_call(
        kernel,
        out_shape=jax.ShapeDtypeStruct((b_pad, output_dim), x.dtype),
        grid=(n_tiles,),
        in_specs=in_specs,
        out_specs=pl.BlockSpec((tile_b, output_dim), lambda i: (i, 0)),
        compiler_params=pltpu.CompilerParams(
            dimension_semantics=("parallel",), **cp_kwargs),
        cost_estimate=cost,
    )(x_p, *flat_wb)

    return out_p[:B] if b_pad != B else out_p


class MLP:
    """JAX/Pallas port of the PyTorch MLP module (forward pass).

    Hidden layers: Linear (fanin-uniform weights, bias=0.1) + activation.
    Last layer:    Linear (uniform(-1e-3, 1e-3) weights and bias), optional
                   trailing activation if last_activation=True.
    Weights are stored transposed vs PyTorch as [in_dim, out_dim] so the hot
    path is a plain y = x @ W + b MXU matmul.
    """

    def __init__(self, key, input_dim, output_dim, hid_dims=(),
                 last_activation=False, activation="relu",
                 param_dtype=jnp.float32):
        assert activation in ("relu", "tanh")
        self.output_dim = output_dim
        self.params = []   # (W [in, out] in param_dtype, b [1, out] f32)
        self.acts = []

        prev = input_dim
        for d in hid_dims:
            key, kw = jax.random.split(key)
            # fanin_init in the PyTorch reference uses size[0] of the [out,in]
            # weight, i.e. bound = 1/sqrt(out_dim); reproduce that convention.
            bound = 1.0 / np.sqrt(d)
            w = jax.random.uniform(kw, (prev, d), jnp.float32, -bound, bound)
            b = jnp.full((1, d), 0.1, jnp.float32)
            self.params.append((w.astype(param_dtype), b))
            self.acts.append(activation)
            prev = d

        key, kw, kb = jax.random.split(key, 3)
        w = jax.random.uniform(kw, (prev, output_dim), jnp.float32, -1e-3, 1e-3)
        b = jax.random.uniform(kb, (1, output_dim), jnp.float32, -1e-3, 1e-3)
        self.params.append((w.astype(param_dtype), b))
        self.acts.append(activation if last_activation else None)

    def __call__(self, ob):
        return mlp_forward(ob, self.params, self.acts, self.output_dim)


def _ref_forward(params, acts, ob):
    """Pure-jnp reference for correctness checking."""
    h = ob.astype(jnp.float32)
    for (w, b), act in zip(params, acts):
        h = h @ w.astype(jnp.float32) + b
        if act == "relu":
            h = jnp.maximum(h, 0.0)
        elif act == "tanh":
            h = jnp.tanh(h)
    return h


if __name__ == "__main__":
    key = jax.random.PRNGKey(0)
    k1, k2, k3, kx1, kx2, kx3 = jax.random.split(key, 6)

    # Test 1: small batch -> grid-less fused kernel (relu, no last activation).
    mlp = MLP(k1, 32, 16, hid_dims=[64, 64], last_activation=False,
              activation="relu")
    x = jax.random.normal(kx1, (8, 32), jnp.float32)
    out = mlp(x)
    jax.block_until_ready(out)
    ref = _ref_forward(mlp.params, mlp.acts, x)
    np.testing.assert_allclose(np.asarray(out), np.asarray(ref),
                               rtol=1e-5, atol=1e-5)
    assert out.shape == (8, 16)

    # Test 2: batch 300 -> 2-tile "parallel" grid (152-row tiles, 4 pad rows),
    # tanh + last_activation, unpadded 10-wide output written directly.
    mlp2 = MLP(k2, 24, 10, hid_dims=[48], last_activation=True,
               activation="tanh")
    x2 = jax.random.normal(kx2, (300, 24), jnp.float32)
    out2 = mlp2(x2)
    jax.block_until_ready(out2)
    ref2 = _ref_forward(mlp2.params, mlp2.acts, x2)
    np.testing.assert_allclose(np.asarray(out2), np.asarray(ref2),
                               rtol=1e-5, atol=1e-5)
    assert out2.shape == (300, 10)

    # Test 3: bf16 weights feeding the MXU (f32 accumulate), 2-tile grid with
    # no batch padding; looser tolerance vs the f32 reference.
    mlp3 = MLP(k3, 32, 16, hid_dims=[64], last_activation=False,
               activation="relu", param_dtype=jnp.bfloat16)
    x3 = jax.random.normal(kx3, (128, 32), jnp.float32)
    out3 = mlp3(x3)
    jax.block_until_ready(out3)
    ref3 = _ref_forward(mlp3.params, mlp3.acts, x3)
    np.testing.assert_allclose(np.asarray(out3), np.asarray(ref3),
                               rtol=2e-2, atol=1e-3)
    assert out3.shape == (128, 16)

    print("KERNEL_OK")
</pallas_src>

<mosaic_0001>
module attributes {stable_mosaic.version = 11 : i64} {
  func.func @_mlp_fused_kernel(%arg0: memref<8x32xf32, #tpu.memory_space<vmem>>, %arg1: memref<32x64xf32, #tpu.memory_space<vmem>>, %arg2: memref<1x64xf32, #tpu.memory_space<vmem>>, %arg3: memref<64x64xf32, #tpu.memory_space<vmem>>, %arg4: memref<1x64xf32, #tpu.memory_space<vmem>>, %arg5: memref<64x16xf32, #tpu.memory_space<vmem>>, %arg6: memref<1x16xf32, #tpu.memory_space<vmem>>, %arg7: memref<8x16xf32, #tpu.memory_space<vmem>>) attributes {dimension_semantics = [], scalar_prefetch = 0 : i64, scratch_operands = 0 : i64, tpu.core_type = #tpu.core_type<tc>} {
    %c0 = arith.constant 0 : index
    %c0_0 = arith.constant 0 : index
    %0 = vector.load %arg0[%c0, %c0_0] : memref<8x32xf32, #tpu.memory_space<vmem>>, vector<8x32xf32>
    %c0_1 = arith.constant 0 : index
    %c0_2 = arith.constant 0 : index
    %1 = vector.load %arg2[%c0_1, %c0_2] : memref<1x64xf32, #tpu.memory_space<vmem>>, vector<1x64xf32>
    %c0_3 = arith.constant 0 : index
    %c0_4 = arith.constant 0 : index
    %2 = vector.load %arg1[%c0_3, %c0_4] : memref<32x64xf32, #tpu.memory_space<vmem>>, vector<32x64xf32>
    %cst = arith.constant dense<0.000000e+00> : vector<8x64xf32>
    %3 = tpu.matmul %0, %2, %cst {dimension_numbers = #tpu.dot_dimension_numbers<[1], [0], [0], [1], [0, 0, 1, 1], [], []>} : vector<8x32xf32>, vector<32x64xf32>, vector<8x64xf32> -> vector<8x64xf32>
    %4 = vector.broadcast %1 : vector<1x64xf32> to vector<8x64xf32>
    %5 = arith.addf %3, %4 : vector<8x64xf32>
    %cst_5 = arith.constant 0.000000e+00 : f32
    %6 = vector.broadcast %cst_5 : f32 to vector<8x64xf32>
    %7 = arith.maximumf %5, %6 : vector<8x64xf32>
    %c0_6 = arith.constant 0 : index
    %c0_7 = arith.constant 0 : index
    %8 = vector.load %arg4[%c0_6, %c0_7] : memref<1x64xf32, #tpu.memory_space<vmem>>, vector<1x64xf32>
    %c0_8 = arith.constant 0 : index
    %c0_9 = arith.constant 0 : index
    %9 = vector.load %arg3[%c0_8, %c0_9] : memref<64x64xf32, #tpu.memory_space<vmem>>, vector<64x64xf32>
    %cst_10 = arith.constant dense<0.000000e+00> : vector<8x64xf32>
    %10 = tpu.matmul %7, %9, %cst_10 {dimension_numbers = #tpu.dot_dimension_numbers<[1], [0], [0], [1], [0, 0, 1, 1], [], []>} : vector<8x64xf32>, vector<64x64xf32>, vector<8x64xf32> -> vector<8x64xf32>
    %11 = vector.broadcast %8 : vector<1x64xf32> to vector<8x64xf32>
    %12 = arith.addf %10, %11 : vector<8x64xf32>
    %cst_11 = arith.constant 0.000000e+00 : f32
    %13 = vector.broadcast %cst_11 : f32 to vector<8x64xf32>
    %14 = arith.maximumf %12, %13 : vector<8x64xf32>
    %c0_12 = arith.constant 0 : index
    %c0_13 = arith.constant 0 : index
    %15 = vector.load %arg6[%c0_12, %c0_13] : memref<1x16xf32, #tpu.memory_space<vmem>>, vector<1x16xf32>
    %c0_14 = arith.constant 0 : index
    %c0_15 = arith.constant 0 : index
    %16 = vector.load %arg5[%c0_14, %c0_15] : memref<64x16xf32, #tpu.memory_space<vmem>>, vector<64x16xf32>
    %cst_16 = arith.constant dense<0.000000e+00> : vector<8x16xf32>
    %17 = tpu.matmul %14, %16, %cst_16 {dimension_numbers = #tpu.dot_dimension_numbers<[1], [0], [0], [1], [0, 0, 1, 1], [], []>} : vector<8x64xf32>, vector<64x16xf32>, vector<8x16xf32> -> vector<8x16xf32>
    %18 = vector.broadcast %15 : vector<1x16xf32> to vector<8x16xf32>
    %19 = arith.addf %17, %18 : vector<8x16xf32>
    %c0_17 = arith.constant 0 : index
    %c0_18 = arith.constant 0 : index
    %20 = vector.load %arg7[%c0_17, %c0_18] : memref<8x16xf32, #tpu.memory_space<vmem>>, vector<8x16xf32>
    tpu.vector_store %arg7[%c0_17, %c0_18], %19 {strides = array<i32>} : memref<8x16xf32, #tpu.memory_space<vmem>>, vector<8x16xf32>,
    return
  }
}

</mosaic_0001>

<llo_original>
// kernel: tpu_custom_call.1
$region0: #{tpu_custom_call.1}
  #allocation0 [shape = 'u32[]', space=smem, size = 0x4, offset = 0x4, fixed_abs, tag = 'smem constant byte address 0x4 - core index']
  #allocation1 [shape = 'u32[144,128]{1,0:T(1,128)}', space=vmem, size = 0x12000, scoped, tag = 'internal scratch']
  %s0 = inlined_call_operand.vmem [shape: f32[8,32], index: 0, kind: input, shape index: {}]
  %s1 = inlined_call_operand.hbm [shape: f32[32,64], index: 1, kind: input, shape index: {}]
  %s2 = inlined_call_operand.vmem [shape: f32[1,64], index: 2, kind: input, shape index: {}]
  %s3 = inlined_call_operand.vmem [shape: f32[64,64], index: 3, kind: input, shape index: {}]
  %s4 = inlined_call_operand.vmem [shape: f32[1,64], index: 4, kind: input, shape index: {}]
  %s5 = inlined_call_operand.vmem [shape: f32[64,16], index: 5, kind: input, shape index: {}]
  %s6 = inlined_call_operand.vmem [shape: f32[1,16], index: 6, kind: input, shape index: {}]
  %s7 = inlined_call_operand.hbm [shape: f32[8,16], index: 7, kind: output, shape index: {}]
  %s8 = sld [smem:[#allocation0]]
  $region42: #{tpu_custom_call.1} parent=0
    _
  %s10 = ssub.s32 1, %s8
  %s11 = scalar_select 0, %s10, %s8
  $region1: #{tpu_custom_call.1} parent=0
    #allocation2 [shape = 'u8[16384]{0}', space=vmem, size = 0x4000, scoped, tag = 'input window, operand 1, single buffered']
    #allocation3 [shape = 's32[1]{0}', space=sflag, size = 0x4, scoped, tag = 'scoped memory for tpu_custom_call.1']
    #allocation4 [shape = 's32[1]{0}', space=sflag, size = 0x4, scoped, tag = 'scoped memory for tpu_custom_call.1']
    #allocation5 [shape = 'u8[4096]{0}', space=vmem, size = 0x1000, scoped, tag = 'output window, operand 0, single buffered']
    %12 = vsyncpa [#allocation3], 0
    %13 = vsyncpa [#allocation4], 0
    // Predicated region
    $region2: #{tpu_custom_call.1} parent=1 // pred_check
      _
    $region3: #{tpu_custom_call.1} parent=1 // pred_check_branch
      %15 = sbr.rel (0) target = $region5
    $region4: #{tpu_custom_call.1} parent=1 // pred_region
      _
    $region5: #{tpu_custom_call.1} parent=1 // pred_fallthru
      _
    // Predicated region
    $region6: #{tpu_custom_call.1} parent=1 // pred_check
      _
    $region7: #{tpu_custom_call.1} parent=1 // pred_check_branch
      %17 = sbr.rel (0) target = $region9
    $region8: #{tpu_custom_call.1} parent=1 // pred_region
      %s19 = ssub.s32 512, 512
      %20 = vsyncadd [#allocation3], %s19
      %s21 = sshll.u32 [#allocation2], 4
      %s22 = int_to_ptr.vmem [resolvable:$true] %s21
      %27 = dma.hbm_to_vmem [thread:$0]  %s1, 512, %s22, [#allocation3], 128, 128, 8
    $region9: #{tpu_custom_call.1} parent=1 // pred_fallthru
      _
    // Predicated region
    $region10: #{tpu_custom_call.1} parent=1 // pred_check
      _
    $region11: #{tpu_custom_call.1} parent=1 // pred_check_branch
      %29 = sbr.rel (0) target = $region13
    $region12: #{tpu_custom_call.1} parent=1 // pred_region
      _
    $region13: #{tpu_custom_call.1} parent=1 // pred_fallthru
      _
    // Predicated region
    $region14: #{tpu_custom_call.1} parent=1 // pred_check
      _
    $region15: #{tpu_custom_call.1} parent=1 // pred_check_branch
      %31 = sbr.rel (0) target = $region17
    $region16: #{tpu_custom_call.1} parent=1 // pred_region
      _
    $region17: #{tpu_custom_call.1} parent=1 // pred_fallthru
      _
    // Predicated region
    $region18: #{tpu_custom_call.1} parent=1 // pred_check
      _
    $region19: #{tpu_custom_call.1} parent=1 // pred_check_branch
      %33 = sbr.rel (0) target = $region21
    $region20: #{tpu_custom_call.1} parent=1 // pred_region
      _
    $region21: #{tpu_custom_call.1} parent=1 // pred_fallthru
      _
    // Predicated region
    $region22: #{tpu_custom_call.1} parent=1 // pred_check
      _
    $region23: #{tpu_custom_call.1} parent=1 // pred_check_branch
      %35 = sbr.rel (0) target = $region25
    $region24: #{tpu_custom_call.1} parent=1 // pred_region
      _
    $region25: #{tpu_custom_call.1} parent=1 // pred_fallthru
      _
    // Predicated region
    $region26: #{tpu_custom_call.1} parent=1 // pred_check
      _
    $region27: #{tpu_custom_call.1} parent=1 // pred_check_branch
      %37 = sbr.rel (0) target = $region29
    $region28: #{tpu_custom_call.1} parent=1 // pred_region
      _
    $region29: #{tpu_custom_call.1} parent=1 // pred_fallthru
      _
    // Predicated region
    $region30: #{tpu_custom_call.1} parent=1 // pred_check
      _
    $region31: #{tpu_custom_call.1} parent=1 // pred_check_branch
      %39 = sbr.rel (0) target = $region33
    $region32: #{tpu_custom_call.1} parent=1 // pred_region
      %40 = dma.done [#allocation3], 512
    $region33: #{tpu_custom_call.1} parent=1 // pred_fallthru
      _
    %v41 = vld [vmem:[%s0] sm:$0xff]
    %v42 = vld [vmem:[%s2] sm:$0x1]
    %v43 = vld [vmem:[#allocation2] sm:$0xff]
    %v44 = vld [vmem:[#allocation2 + $0x8] sm:$0xff]
    %v45 = vld [vmem:[#allocation2 + $0x10] sm:$0xff]
    %v46 = vld [vmem:[#allocation2 + $0x18] sm:$0xff]
    %v48 = vlaneseq
    %v49 = vshrl.u32 %v48, 7
    %v50 = vsub.s32 0, %v49
    %v51 = vrot.slane %v42, %v50
    %vm53 = vcmask 261120
    %v55 = vsel %vm53, %v41, 0
    %57 = vmatprep.subr.mxu0 0.0
    %58 = vmatpush1.msra.mxu0 %v43
    %59 = vmatprep.subr.mxu0 0.0
    %60 = vmatpush1.msra.mxu0 %v44
    %61 = vmatprep.subr.mxu0 0.0
    %62 = vmatpush1.msra.mxu0 %v45
    %63 = vmatprep.subr.mxu0 0.0
    %64 = vmatpush1.msra.mxu0 %v46
    %65 = vmatprep.subr.mxu0 0.0
    %66 = vmatpush1.msra.mxu0 0.0
    %67 = vmatprep.subr.mxu0 0.0
    %68 = vmatpush1.msra.mxu0 0.0
    %69 = vmatprep.subr.mxu0 0.0
    %70 = vmatpush1.msra.mxu0 0.0
    %71 = vmatprep.subr.mxu0 0.0
    %72 = vmatpush1.msra.mxu0 0.0
    %73 = vmatprep.subr.mxu0 0.0
    %74 = vmatpush1.msra.mxu0 0.0
    %75 = vmatprep.subr.mxu0 0.0
    %76 = vmatpush1.msra.mxu0 0.0
    %77 = vmatprep.subr.mxu0 0.0
    %78 = vmatpush1.msra.mxu0 0.0
    %79 = vmatprep.subr.mxu0 0.0
    %80 = vmatpush1.msra.mxu0 0.0
    %81 = vmatprep.subr.mxu0 0.0
    %82 = vmatpush1.msra.mxu0 0.0
    %83 = vmatprep.subr.mxu0 0.0
    %84 = vmatpush1.msra.mxu0 0.0
    %85 = vmatprep.subr.mxu0 0.0
    %86 = vmatpush1.msra.mxu0 0.0
    %87 = vmatprep.subr.mxu0 0.0
    %88 = vmatpush1.msra.mxu0 0.0
    %89 = vmatprep.subr.mxu0 0.0
    %90 = vmatpush1.msra.mxu0 0.0
    %91 = vmatprep.subr.mxu0 0.0
    %92 = vmatpush1.msra.mxu0 0.0
    %93 = vmatprep.subr.mxu0 0.0
    %94 = vmatpush1.msra.mxu0 0.0
    %95 = vmatprep.subr.mxu0 0.0
    %96 = vmatpush1.msra.mxu0 0.0
    %97 = vmatprep.subr.mxu0 0.0
    %98 = vmatpush1.msra.mxu0 0.0
    %99 = vmatprep.subr.mxu0 0.0
    %100 = vmatpush1.msra.mxu0 0.0
    %101 = vmatprep.subr.mxu0 0.0
    %102 = vmatpush1.msra.mxu0 0.0
    %103 = vmatprep.subr.mxu0 0.0
    %104 = vmatpush1.msra.mxu0 0.0
    %105 = vmatprep.subr.mxu0 0.0
    %106 = vmatpush1.msra.mxu0 0.0
    %107 = vmatprep.subr.mxu0 0.0
    %108 = vmatpush1.msra.mxu0 0.0
    %109 = vmatprep.subr.mxu0 0.0
    %110 = vmatpush1.msra.mxu0 0.0
    %111 = vmatprep.subr.mxu0 0.0
    %112 = vmatpush1.msra.mxu0 0.0
    %113 = vmatprep.subr.mxu0 0.0
    %114 = vmatpush1.msra.mxu0 0.0
    %115 = vmatprep.subr.mxu0 0.0
    %116 = vmatpush1.msra.mxu0 0.0
    %117 = vmatprep.subr.mxu0 0.0
    %118 = vmatpush1.msra.mxu0 0.0
    %119 = vmatprep.subr.mxu0 0.0
    %120 = vmatpush1.msra.mxu0 0.0
    %121 = vmatprep.mubr.f32.mxu0 0.0
    %122 = vmatmul.mubr.f32.gmra.mrb[0].mxu0 %v55
    %v123 = vpop.f32.mrb[0].mxu0
    %v124 = vadd.f32 %v51, %v123
    %v125 = vpop.f32.mrb[0].mxu0
    %126 = vdwg.mxu0
    %v127 = vmax.f32 %v124, 0.0
    %v128 = vld [vmem:[%s4] sm:$0x1]
    %v129 = vld [vmem:[%s3] sm:$0xff]
    %v130 = vld [vmem:[%s3 + $0x8] sm:$0xff]
    %v131 = vld [vmem:[%s3 + $0x10] sm:$0xff]
    %v132 = vld [vmem:[%s3 + $0x18] sm:$0xff]
    %v133 = vld [vmem:[%s3 + $0x20] sm:$0xff]
    %v134 = vld [vmem:[%s3 + $0x28] sm:$0xff]
    %v135 = vld [vmem:[%s3 + $0x30] sm:$0xff]
    %v136 = vld [vmem:[%s3 + $0x38] sm:$0xff]
    %v138 = vlaneseq
    %v139 = vshrl.u32 %v138, 7
    %v140 = vsub.s32 0, %v139
    %v141 = vrot.slane %v128, %v140
    %vm143 = vcmask 523264
    %v145 = vsel %vm143, %v127, 0
    %147 = vmatprep.subr.mxu0 0.0
    %148 = vmatpush1.msra.mxu0 %v129
    %149 = vmatprep.subr.mxu0 0.0
    %150 = vmatpush1.msra.mxu0 %v130
    %151 = vmatprep.subr.mxu0 0.0
    %152 = vmatpush1.msra.mxu0 %v131
    %153 = vmatprep.subr.mxu0 0.0
    %154 = vmatpush1.msra.mxu0 %v132
    %155 = vmatprep.subr.mxu0 0.0
    %156 = vmatpush1.msra.mxu0 %v133
    %157 = vmatprep.subr.mxu0 0.0
    %158 = vmatpush1.msra.mxu0 %v134
    %159 = vmatprep.subr.mxu0 0.0
    %160 = vmatpush1.msra.mxu0 %v135
    %161 = vmatprep.subr.mxu0 0.0
    %162 = vmatpush1.msra.mxu0 %v136
    %163 = vmatprep.subr.mxu0 0.0
    %164 = vmatpush1.msra.mxu0 0.0
    %165 = vmatprep.subr.mxu0 0.0
    %166 = vmatpush1.msra.mxu0 0.0
    %167 = vmatprep.subr.mxu0 0.0
    %168 = vmatpush1.msra.mxu0 0.0
    %169 = vmatprep.subr.mxu0 0.0
    %170 = vmatpush1.msra.mxu0 0.0
    %171 = vmatprep.subr.mxu0 0.0
    %172 = vmatpush1.msra.mxu0 0.0
    %173 = vmatprep.subr.mxu0 0.0
    %174 = vmatpush1.msra.mxu0 0.0
    %175 = vmatprep.subr.mxu0 0.0
    %176 = vmatpush1.msra.mxu0 0.0
    %177 = vmatprep.subr.mxu0 0.0
    %178 = vmatpush1.msra.mxu0 0.0
    %179 = vmatprep.subr.mxu0 0.0
    %180 = vmatpush1.msra.mxu0 0.0
    %181 = vmatprep.subr.mxu0 0.0
    %182 = vmatpush1.msra.mxu0 0.0
    %183 = vmatprep.subr.mxu0 0.0
    %184 = vmatpush1.msra.mxu0 0.0
    %185 = vmatprep.subr.mxu0 0.0
    %186 = vmatpush1.msra.mxu0 0.0
    %187 = vmatprep.subr.mxu0 0.0
    %188 = vmatpush1.msra.mxu0 0.0
    %189 = vmatprep.subr.mxu0 0.0
    %190 = vmatpush1.msra.mxu0 0.0
    %191 = vmatprep.subr.mxu0 0.0
    %192 = vmatpush1.msra.mxu0 0.0
    %193 = vmatprep.subr.mxu0 0.0
    %194 = vmatpush1.msra.mxu0 0.0
    %195 = vmatprep.subr.mxu0 0.0
    %196 = vmatpush1.msra.mxu0 0.0
    %197 = vmatprep.subr.mxu0 0.0
    %198 = vmatpush1.msra.mxu0 0.0
    %199 = vmatprep.subr.mxu0 0.0
    %200 = vmatpush1.msra.mxu0 0.0
    %201 = vmatprep.subr.mxu0 0.0
    %202 = vmatpush1.msra.mxu0 0.0
    %203 = vmatprep.subr.mxu0 0.0
    %204 = vmatpush1.msra.mxu0 0.0
    %205 = vmatprep.subr.mxu0 0.0
    %206 = vmatpush1.msra.mxu0 0.0
    %207 = vmatprep.subr.mxu0 0.0
    %208 = vmatpush1.msra.mxu0 0.0
    %209 = vmatprep.subr.mxu0 0.0
    %210 = vmatpush1.msra.mxu0 0.0
    %211 = vmatprep.mubr.f32.mxu0 0.0
    %212 = vmatmul.mubr.f32.gmra.mrb[0].mxu0 %v145
    %v213 = vpop.f32.mrb[0].mxu0
    %v214 = vadd.f32 %v141, %v213
    %v215 = vpop.f32.mrb[0].mxu0
    %216 = vdwg.mxu0
    %v217 = vmax.f32 %v214, 0.0
    %v218 = vld [vmem:[%s6] sm:$0x1]
    %v219 = vld [vmem:[%s5] sm:$0xff]
    %v220 = vld [vmem:[%s5 + $0x8] sm:$0xff]
    %v221 = vld [vmem:[%s5 + $0x10] sm:$0xff]
    %v222 = vld [vmem:[%s5 + $0x18] sm:$0xff]
    %v223 = vld [vmem:[%s5 + $0x20] sm:$0xff]
    %v224 = vld [vmem:[%s5 + $0x28] sm:$0xff]
    %v225 = vld [vmem:[%s5 + $0x30] sm:$0xff]
    %v226 = vld [vmem:[%s5 + $0x38] sm:$0xff]
    %v228 = vlaneseq
    %v229 = vshrl.u32 %v228, 7
    %v230 = vsub.s32 0, %v229
    %v231 = vrot.slane %v218, %v230
    %v234 = vsel %vm143, %v217, 0
    %236 = vmatprep.subr.mxu0 0.0
    %237 = vmatpush1.msra.mxu0 %v219
    %238 = vmatprep.subr.mxu0 0.0
    %239 = vmatpush1.msra.mxu0 %v220
    %240 = vmatprep.subr.mxu0 0.0
    %241 = vmatpush1.msra.mxu0 %v221
    %242 = vmatprep.subr.mxu0 0.0
    %243 = vmatpush1.msra.mxu0 %v222
    %244 = vmatprep.subr.mxu0 0.0
    %245 = vmatpush1.msra.mxu0 %v223
    %246 = vmatprep.subr.mxu0 0.0
    %247 = vmatpush1.msra.mxu0 %v224
    %248 = vmatprep.subr.mxu0 0.0
    %249 = vmatpush1.msra.mxu0 %v225
    %250 = vmatprep.subr.mxu0 0.0
    %251 = vmatpush1.msra.mxu0 %v226
    %252 = vmatprep.subr.mxu0 0.0
    %253 = vmatpush1.msra.mxu0 0.0
    %254 = vmatprep.subr.mxu0 0.0
    %255 = vmatpush1.msra.mxu0 0.0
    %256 = vmatprep.subr.mxu0 0.0
    %257 = vmatpush1.msra.mxu0 0.0
    %258 = vmatprep.subr.mxu0 0.0
    %259 = vmatpush1.msra.mxu0 0.0
    %260 = vmatprep.subr.mxu0 0.0
    %261 = vmatpush1.msra.mxu0 0.0
    %262 = vmatprep.subr.mxu0 0.0
    %263 = vmatpush1.msra.mxu0 0.0
    %264 = vmatprep.subr.mxu0 0.0
    %265 = vmatpush1.msra.mxu0 0.0
    %266 = vmatprep.subr.mxu0 0.0
    %267 = vmatpush1.msra.mxu0 0.0
    %268 = vmatprep.subr.mxu0 0.0
    %269 = vmatpush1.msra.mxu0 0.0
    %270 = vmatprep.subr.mxu0 0.0
    %271 = vmatpush1.msra.mxu0 0.0
    %272 = vmatprep.subr.mxu0 0.0
    %273 = vmatpush1.msra.mxu0 0.0
    %274 = vmatprep.subr.mxu0 0.0
    %275 = vmatpush1.msra.mxu0 0.0
    %276 = vmatprep.subr.mxu0 0.0
    %277 = vmatpush1.msra.mxu0 0.0
    %278 = vmatprep.subr.mxu0 0.0
    %279 = vmatpush1.msra.mxu0 0.0
    %280 = vmatprep.subr.mxu0 0.0
    %281 = vmatpush1.msra.mxu0 0.0
    %282 = vmatprep.subr.mxu0 0.0
    %283 = vmatpush1.msra.mxu0 0.0
    %284 = vmatprep.subr.mxu0 0.0
    %285 = vmatpush1.msra.mxu0 0.0
    %286 = vmatprep.subr.mxu0 0.0
    %287 = vmatpush1.msra.mxu0 0.0
    %288 = vmatprep.subr.mxu0 0.0
    %289 = vmatpush1.msra.mxu0 0.0
    %290 = vmatprep.subr.mxu0 0.0
    %291 = vmatpush1.msra.mxu0 0.0
    %292 = vmatprep.subr.mxu0 0.0
    %293 = vmatpush1.msra.mxu0 0.0
    %294 = vmatprep.subr.mxu0 0.0
    %295 = vmatpush1.msra.mxu0 0.0
    %296 = vmatprep.subr.mxu0 0.0
    %297 = vmatpush1.msra.mxu0 0.0
    %298 = vmatprep.subr.mxu0 0.0
    %299 = vmatpush1.msra.mxu0 0.0
    %300 = vmatprep.mubr.f32.mxu0 0.0
    %301 = vmatmul.mubr.f32.gmra.mrb[0].mxu0 %v234
    %v302 = vpop.f32.mrb[0].mxu0
    %v303 = vadd.f32 %v231, %v302
    %v304 = vpop.f32.mrb[0].mxu0
    %305 = vdwg.mxu0
    %vm306 = vcmask 130048
    %307 = vst.msk [vmem:[#allocation5] sm:$0xff] %vm306, %v303
    // Predicated region
    $region34: #{tpu_custom_call.1} parent=1 // pred_check
      _
    $region35: #{tpu_custom_call.1} parent=1 // pred_check_branch
      %309 = sbr.rel (0) target = $region37
    $region36: #{tpu_custom_call.1} parent=1 // pred_region
      %s311 = ssub.s32 128, 128
      %312 = vsyncadd [#allocation4], %s311
      %s314 = sshll.u32 [#allocation5], 4
      %s315 = int_to_ptr.vmem [resolvable:$true] %s314
      %317 = dma.vmem_to_hbm [thread:$0]  %s315, 128, %s7, [#allocation4]
    $region37: #{tpu_custom_call.1} parent=1 // pred_fallthru
      _
    // Predicated region
    $region38: #{tpu_custom_call.1} parent=1 // pred_check
      _
    $region39: #{tpu_custom_call.1} parent=1 // pred_check_branch
      %319 = sbr.rel (0) target = $region41
    $region40: #{tpu_custom_call.1} parent=1 // pred_region
      %320 = dma.done [#allocation4], 128
    $region41: #{tpu_custom_call.1} parent=1 // pred_fallthru
      _
    %321 = vsyncpa [#allocation3], 1
    %322 = vsyncpa [#allocation4], 1

</llo_original>
